<compile_context>
chip_gen: v7x
topology: tpu7x:2x2x1
jax: 0.10.0
libtpu: 0.0.40
codegen_flags: <defaults>
</compile_context>

<pallas_src>
import functools

import jax
import jax.numpy as jnp
from jax import lax
from jax.experimental import pallas as pl
from jax.experimental.pallas import tpu as pltpu

_BN_EPS = 1e-5


def _add_norm_dropout_kernel(x_ref, *rest, dropout_p):
    if dropout_p > 0.0:
        bits_ref, wt_ref, b_ref, o_ref = rest
    else:
        bits_ref = None
        wt_ref, b_ref, o_ref = rest

    # x: (N, tS, D) tile.  BN stats are per-S over (N, D), so tiling over S is
    # embarrassingly parallel.
    x = x_ref[...].astype(jnp.float32)
    N, tS, D = x_ref.shape

    # ---- BatchNorm1d (training mode, affine=False): one-pass mean / E[x^2] ----
    s1 = jnp.mean(x, axis=(0, 2), keepdims=True)          # (1, tS, 1)
    s2 = jnp.mean(x * x, axis=(0, 2), keepdims=True)      # (1, tS, 1)
    var = s2 - s1 * s1                                     # biased variance
    normed = (x - s1) * lax.rsqrt(var + _BN_EPS)

    # ---- sublayer: Linear(D, D): normed @ W^T + b.  The inverted-dropout
    #      keep scale 1/(1-p) is already folded into W^T / b by the wrapper. ----
    mxu_dtype = jnp.bfloat16 if D >= 128 else jnp.float32
    y = jnp.dot(normed.reshape(N * tS, D).astype(mxu_dtype),
                wt_ref[...].astype(mxu_dtype),
                preferred_element_type=jnp.float32)
    y = (y + b_ref[...].astype(jnp.float32)).reshape(N, tS, D)

    # ---- dropout: integer-threshold compare on uniform int32 bits ----
    if dropout_p > 0.0:
        # bits are uniform over the full signed int32 range, so
        # P(bits >= thr) == 1 - dropout_p with thr = round(p * 2^32) - 2^31.
        thr = min(int(round(dropout_p * 2.0 ** 32)) - 2 ** 31, 2 ** 31 - 1)
        y = jnp.where(bits_ref[...] >= jnp.int32(thr), y, 0.0)

    # ---- residual add ----
    o_ref[...] = (x + y).astype(o_ref.dtype)


def _pick_tile_s(N, S, D, target_bytes=2 * 1024 * 1024):
    """Largest divisor of S that is layout-legal (multiple of 8, or S itself)
    whose f32 tile stays within a few MiB (VMEM-safe on v7x's 64 MiB)."""
    cands = [t for t in range(1, S + 1)
             if S % t == 0 and (t % 8 == 0 or t == S)]
    fitting = [t for t in cands if N * t * D * 4 <= target_bytes]
    return max(fitting) if fitting else min(cands)


def add_and_norm_with_dropout(values, w_t, bias, dropout_key, *,
                              dropout_p, training=True, tile_s=None):
    """values: (N, S, D) f32; w_t: (D, D) = Linear weight transposed;
    bias: (1, D); dropout_key: jax PRNG key used only when dropout is active."""
    N, S, D = values.shape
    p = float(dropout_p) if training else 0.0
    if not 0.0 <= p < 1.0:
        raise ValueError("dropout_p must be in [0, 1)")

    if tile_s is None:
        tile_s = _pick_tile_s(N, S, D)
    assert S % tile_s == 0 and (tile_s % 8 == 0 or tile_s == S)
    grid = (S // tile_s,)

    # Fold the inverted-dropout keep scale into the linear parameters once,
    # outside the kernel (D^2 + D values at trace time).
    if p > 0.0:
        scale = 1.0 / (1.0 - p)
        w_t = w_t * scale
        bias = bias * scale

    tile_spec = pl.BlockSpec((N, tile_s, D), lambda s: (0, s, 0))
    wt_spec = pl.BlockSpec((D, D), lambda s: (0, 0))      # VMEM-resident
    b_spec = pl.BlockSpec((1, D), lambda s: (0, 0))       # VMEM-resident

    in_specs = [tile_spec]
    args = [values]
    if p > 0.0:
        # TODO(synk): on real TPU hardware the bits could be drawn in-kernel via
        # pltpu.prng_seed(seed + pl.program_id(0)) / pltpu.prng_random_bits to
        # save this HBM read; they are generated host-side here so the kernel
        # also runs under TPU interpret mode (no prng_seed lowering there).
        bits = lax.bitcast_convert_type(
            jax.random.bits(dropout_key, (N, S, D), jnp.uint32), jnp.int32)
        in_specs.append(tile_spec)
        args.append(bits)
    in_specs += [wt_spec, b_spec]
    args += [w_t, bias]

    # TODO(synk): BatchNorm1d eval-mode running statistics are not implemented;
    # batch statistics (training mode) are always used, matching the training
    # forward of the reference module.
    kernel = functools.partial(_add_norm_dropout_kernel, dropout_p=p)
    return pl.pallas_call(
        kernel,
        out_shape=jax.ShapeDtypeStruct((N, S, D), values.dtype),
        grid=grid,
        in_specs=in_specs,
        out_specs=tile_spec,
        compiler_params=pltpu.CompilerParams(
            dimension_semantics=("parallel",),        # megacore split on v7x
            vmem_limit_bytes=32 * 1024 * 1024),
    )(*args)


if __name__ == "__main__":
    # Small shapes consistent with (batch_size, max_seq_length, dim_model).
    N, S, D = 2, 16, 32
    dropout_p = 0.1

    key = jax.random.PRNGKey(0)
    k_x, k_w, k_b, k_drop = jax.random.split(key, 4)

    values = jax.random.normal(k_x, (N, S, D), dtype=jnp.float32)
    # Deterministic "sublayer": Linear(D, D).  PyTorch stores weight as
    # (out, in) and computes x @ W.T, so pass W.T directly.
    w = jax.random.normal(k_w, (D, D), dtype=jnp.float32) / jnp.sqrt(D)
    w_t = jnp.transpose(w)
    bias = jax.random.normal(k_b, (1, D), dtype=jnp.float32) * 0.01

    out = add_and_norm_with_dropout(values, w_t, bias, k_drop,
                                    dropout_p=dropout_p, training=True,
                                    tile_s=8)   # grid=(2,) exercises tiling
    jax.block_until_ready(out)
    assert out.shape == (N, S, D) and out.dtype == jnp.float32
    assert bool(jnp.all(jnp.isfinite(out)))
    print("KERNEL_OK")
</pallas_src>

<mosaic_0001>
module attributes {stable_mosaic.version = 11 : i64} {
  func.func @_add_norm_dropout_kernel(%arg0: i32, %arg1: memref<2x8x32xf32, #tpu.memory_space<vmem>>, %arg2: memref<2x8x32xi32, #tpu.memory_space<vmem>>, %arg3: memref<32x32xf32, #tpu.memory_space<vmem>>, %arg4: memref<1x32xf32, #tpu.memory_space<vmem>>, %arg5: memref<2x8x32xf32, #tpu.memory_space<vmem>>) attributes {dimension_semantics = [#tpu.dimension_semantics<parallel>], iteration_bounds = array<i64: 2>, scalar_prefetch = 0 : i64, scratch_operands = 0 : i64, tpu.core_type = #tpu.core_type<tc>, window_params = [{transform_indices = @transform_0, window_bounds = array<i64: 2, 8, 32>}, {transform_indices = @transform_1, window_bounds = array<i64: 2, 8, 32>}, {pipeline_mode = #tpu.pipeline_mode<synchronous>, transform_indices = @transform_2, window_bounds = array<i64: 32, 32>}, {pipeline_mode = #tpu.pipeline_mode<synchronous>, transform_indices = @transform_3, window_bounds = array<i64: 1, 32>}, {transform_indices = @transform_4, window_bounds = array<i64: 2, 8, 32>}]} {
    %c0 = arith.constant 0 : index
    %c0_0 = arith.constant 0 : index
    %c0_1 = arith.constant 0 : index
    %0 = vector.load %arg1[%c0, %c0_0, %c0_1] : memref<2x8x32xf32, #tpu.memory_space<vmem>>, vector<2x8x32xf32>
    %cst = arith.constant dense<0.000000e+00> : vector<8xf32>
    %1 = vector.multi_reduction <add>, %0, %cst [0, 2] : vector<2x8x32xf32> to vector<8xf32>
    %2 = vector.shape_cast %1 : vector<8xf32> to vector<1x8x1xf32>
    %cst_2 = arith.constant 6.400000e+01 : f32
    %3 = vector.broadcast %cst_2 : f32 to vector<1x8x1xf32>
    %4 = arith.divf %2, %3 : vector<1x8x1xf32>
    %5 = arith.mulf %0, %0 : vector<2x8x32xf32>
    %cst_3 = arith.constant dense<0.000000e+00> : vector<8xf32>
    %6 = vector.multi_reduction <add>, %5, %cst_3 [0, 2] : vector<2x8x32xf32> to vector<8xf32>
    %7 = vector.shape_cast %6 : vector<8xf32> to vector<1x8x1xf32>
    %cst_4 = arith.constant 6.400000e+01 : f32
    %8 = vector.broadcast %cst_4 : f32 to vector<1x8x1xf32>
    %9 = arith.divf %7, %8 : vector<1x8x1xf32>
    %10 = arith.mulf %4, %4 : vector<1x8x1xf32>
    %11 = arith.subf %9, %10 : vector<1x8x1xf32>
    %12 = vector.broadcast %4 : vector<1x8x1xf32> to vector<2x8x32xf32>
    %13 = arith.subf %0, %12 : vector<2x8x32xf32>
    %cst_5 = arith.constant 9.99999974E-6 : f32
    %14 = vector.broadcast %cst_5 : f32 to vector<1x8x1xf32>
    %15 = arith.addf %11, %14 : vector<1x8x1xf32>
    %16 = math.rsqrt %15 : vector<1x8x1xf32>
    %17 = vector.broadcast %16 : vector<1x8x1xf32> to vector<2x8x32xf32>
    %18 = arith.mulf %13, %17 : vector<2x8x32xf32>
    %19 = vector.shape_cast %18 : vector<2x8x32xf32> to vector<16x32xf32>
    %c0_6 = arith.constant 0 : index
    %c0_7 = arith.constant 0 : index
    %20 = vector.load %arg3[%c0_6, %c0_7] : memref<32x32xf32, #tpu.memory_space<vmem>>, vector<32x32xf32>
    %cst_8 = arith.constant dense<0.000000e+00> : vector<16x32xf32>
    %21 = tpu.matmul %19, %20, %cst_8 {dimension_numbers = #tpu.dot_dimension_numbers<[1], [0], [0], [1], [0, 0, 1, 1], [], []>} : vector<16x32xf32>, vector<32x32xf32>, vector<16x32xf32> -> vector<16x32xf32>
    %c0_9 = arith.constant 0 : index
    %c0_10 = arith.constant 0 : index
    %22 = vector.load %arg4[%c0_9, %c0_10] : memref<1x32xf32, #tpu.memory_space<vmem>>, vector<1x32xf32>
    %23 = vector.broadcast %22 : vector<1x32xf32> to vector<16x32xf32>
    %24 = arith.addf %21, %23 : vector<16x32xf32>
    %25 = vector.shape_cast %24 : vector<16x32xf32> to vector<2x8x32xf32>
    %c0_11 = arith.constant 0 : index
    %c0_12 = arith.constant 0 : index
    %c0_13 = arith.constant 0 : index
    %26 = vector.load %arg2[%c0_11, %c0_12, %c0_13] : memref<2x8x32xi32, #tpu.memory_space<vmem>>, vector<2x8x32xi32>
    %c-1717986918_i32 = arith.constant -1717986918 : i32
    %27 = vector.broadcast %c-1717986918_i32 : i32 to vector<2x8x32xi32>
    %28 = arith.cmpi sge, %26, %27 : vector<2x8x32xi32>
    %cst_14 = arith.constant 0.000000e+00 : f32
    %29 = vector.broadcast %cst_14 : f32 to vector<2x8x32xf32>
    %30 = arith.select %28, %25, %29 : vector<2x8x32xi1>, vector<2x8x32xf32>
    %31 = arith.addf %0, %30 : vector<2x8x32xf32>
    %c0_15 = arith.constant 0 : index
    %c0_16 = arith.constant 0 : index
    %c0_17 = arith.constant 0 : index
    %32 = vector.load %arg5[%c0_15, %c0_16, %c0_17] : memref<2x8x32xf32, #tpu.memory_space<vmem>>, vector<2x8x32xf32>
    tpu.vector_store %arg5[%c0_15, %c0_16, %c0_17], %31 {strides = array<i32>} : memref<2x8x32xf32, #tpu.memory_space<vmem>>, vector<2x8x32xf32>,
    return
  }
  func.func @transform_0(%arg0: i32) -> (i32, i32, i32) {
    %c0_i32 = arith.constant 0 : i32
    %c0_i32_0 = arith.constant 0 : i32
    %c0_i32_1 = arith.constant 0 : i32
    return %c0_i32, %arg0, %c0_i32_0 : i32, i32, i32
  }
  func.func @transform_1(%arg0: i32) -> (i32, i32, i32) {
    %c0_i32 = arith.constant 0 : i32
    %c0_i32_0 = arith.constant 0 : i32
    %c0_i32_1 = arith.constant 0 : i32
    return %c0_i32, %arg0, %c0_i32_0 : i32, i32, i32
  }
  func.func @transform_2(%arg0: i32) -> (i32, i32) {
    %c0_i32 = arith.constant 0 : i32
    %c0_i32_0 = arith.constant 0 : i32
    %c0_i32_1 = arith.constant 0 : i32
    return %c0_i32, %c0_i32_0 : i32, i32
  }
  func.func @transform_3(%arg0: i32) -> (i32, i32) {
    %c0_i32 = arith.constant 0 : i32
    %c0_i32_0 = arith.constant 0 : i32
    %c0_i32_1 = arith.constant 0 : i32
    return %c0_i32, %c0_i32_0 : i32, i32
  }
  func.func @transform_4(%arg0: i32) -> (i32, i32, i32) {
    %c0_i32 = arith.constant 0 : i32
    %c0_i32_0 = arith.constant 0 : i32
    %c0_i32_1 = arith.constant 0 : i32
    return %c0_i32, %arg0, %c0_i32_0 : i32, i32, i32
  }
}

</mosaic_0001>

<llo_original>
// kernel: tpu_custom_call.1
$region0: #{tpu_custom_call.1}
  #allocation0 [shape = 'u32[]', space=smem, size = 0x4, offset = 0x4, fixed_abs, tag = 'smem constant byte address 0x4 - core index']
  #allocation1 [shape = 'u32[144,128]{1,0:T(1,128)}', space=vmem, size = 0x12000, scoped, tag = 'internal scratch']
  %s0 = inlined_call_operand.hbm [shape: f32[2,16,32], index: 0, kind: input, shape index: {}]
  %s1 = inlined_call_operand.hbm [shape: s32[2,16,32], index: 1, kind: input, shape index: {}]
  %s2 = inlined_call_operand.hbm [shape: f32[32,32], index: 2, kind: input, shape index: {}]
  %s3 = inlined_call_operand.vmem [shape: f32[1,32], index: 3, kind: input, shape index: {}]
  %s4 = inlined_call_operand.hbm [shape: f32[2,16,32], index: 4, kind: output, shape index: {}]
  %s5 = sld [smem:[#allocation0]]
  $region61: #{tpu_custom_call.1} parent=0
    _
  %s7 = ssub.s32 1, %s5
  %s8 = scalar_select 0, %s7, %s5
  $region1: #{tpu_custom_call.1} parent=0
    #allocation2 [shape = 'u8[16384]{0}', space=vmem, size = 0x4000, scoped, tag = 'input window, operand 0']
    #allocation3 [shape = 's32[2]{0}', space=sflag, size = 0x8, scoped, tag = 'scoped memory for tpu_custom_call.1']
    #allocation4 [shape = 's32[2]{0}', space=sflag, size = 0x8, scoped, tag = 'scoped memory for tpu_custom_call.1']
    #allocation5 [shape = 'u8[16384]{0}', space=vmem, size = 0x4000, scoped, tag = 'input window, operand 1']
    #allocation6 [shape = 's32[2]{0}', space=sflag, size = 0x8, scoped, tag = 'scoped memory for tpu_custom_call.1']
    #allocation7 [shape = 'u8[16384]{0}', space=vmem, size = 0x4000, scoped, tag = 'input window, operand 2, single buffered']
    #allocation8 [shape = 'u8[16384]{0}', space=vmem, size = 0x4000, scoped, tag = 'output window, operand 0']
    %9 = vsyncpa [#allocation3], 0
    %s10 = scalar_lea.sflag [#allocation3], 1
    %11 = vsyncpa %s10, 0
    %12 = vsyncpa [#allocation6], 0
    %s13 = scalar_lea.sflag [#allocation6], 1
    %14 = vsyncpa %s13, 0
    %15 = vsyncpa [#allocation4], 0
    %s16 = scalar_lea.sflag [#allocation4], 1
    %17 = vsyncpa %s16, 0
    loop: start=0, step=1, limit=4
    $region2: #{tpu_custom_call.1} parent=1 // loop_pre_header
      _
    $region3: #{tpu_custom_call.1} parent=1 // loop_header
      %s19 = sphi 0, %s23
      %p20 = scmp.ge.s32.totalorder %s19, 4
      %s29 = sphi 0, %s31
      %s32 = sphi 0, %s29
      %s33 = sphi 0, %s32
      %s49 = sphi 0, %s33
      %s55 = sphi 0, %s57
      %s58 = sphi 0, %s55
      %s59 = sphi 0, %s58
      %s75 = sphi 0, %s59
      %s79 = sphi 0, %s79
      %s81 = sphi 0, %s79
      %s82 = sphi 0, %s81
      %s96 = sphi 0, %s82
      %s100 = sphi 0, %s100
      %s102 = sphi 0, %s100
      %s103 = sphi 0, %s102
      %s117 = sphi 0, %s103
      %s123 = sphi 0, %s125
      %s126 = sphi 0, %s123
      %s127 = sphi 0, %s126
      %s143 = sphi 0, %s127
    $region4: #{tpu_custom_call.1} parent=1 // loop_header_branch
      %22 = sbr.rel (%p20) target = $region8
    $region5: #{tpu_custom_call.1} parent=1 // loop_body
      %s24 = ssub.s32 %s19, 1
      %s25 = ssub.s32 %s19, 2
      %s26 = sadd.s32 %s19, 1
      %s27 = ssub.s32 %s19, %s26
      %p28 = scmp.eq.s32.totalorder %s27, 0
      %s30 = sadd.s32 %s29, 1
      %s31 = scalar_select %p28, %s29, %s30
      %p34 = pneg %p28
      %p35 = scmp.eq.s32.totalorder %s19, 1
      %p36 = por %p34, %p35
      %p37 = scmp.ne.s32.totalorder %s29, %s32
      %p38 = scmp.eq.s32.totalorder %s19, 0
      %p39 = por %p37, %p38
      %p40 = scmp.ne.s32.totalorder %s29, %s32
      %p41 = scmp.eq.s32.totalorder %s24, 1
      %p42 = por %p40, %p41
      %p43 = scmp.ne.s32.totalorder %s32, %s33
      %p44 = scmp.eq.s32.totalorder %s24, 0
      %p45 = por %p43, %p44
      %p46 = scmp.ne.s32.totalorder %s32, %s33
      %p47 = scmp.eq.s32.totalorder %s25, 1
      %p48 = por %p46, %p47
      %p50 = scmp.ne.s32.totalorder %s33, %s49
      %p51 = scmp.eq.s32.totalorder %s25, 0
      %p52 = por %p50, %p51
      %s53 = ssub.s32 %s19, %s26
      %p54 = scmp.eq.s32.totalorder %s53, 0
      %s56 = sadd.s32 %s55, 1
      %s57 = scalar_select %p54, %s55, %s56
      %p60 = pneg %p54
      %p61 = scmp.eq.s32.totalorder %s19, 1
      %p62 = por %p60, %p61
      %p63 = scmp.ne.s32.totalorder %s55, %s58
      %p64 = scmp.eq.s32.totalorder %s19, 0
      %p65 = por %p63, %p64
      %p66 = scmp.ne.s32.totalorder %s55, %s58
      %p67 = scmp.eq.s32.totalorder %s24, 1
      %p68 = por %p66, %p67
      %p69 = scmp.ne.s32.totalorder %s58, %s59
      %p70 = scmp.eq.s32.totalorder %s24, 0
      %p71 = por %p69, %p70
      %p72 = scmp.ne.s32.totalorder %s58, %s59
      %p73 = scmp.eq.s32.totalorder %s25, 1
      %p74 = por %p72, %p73
      %p76 = scmp.ne.s32.totalorder %s59, %s75
      %p77 = scmp.eq.s32.totalorder %s25, 0
      %p78 = por %p76, %p77
      %s80 = sadd.s32 %s79, 1
      %p83 = scmp.eq.s32.totalorder %s19, 1
      %p84 = scmp.ne.s32.totalorder %s79, %s81
      %p85 = scmp.eq.s32.totalorder %s19, 0
      %p86 = por %p84, %p85
      %p87 = scmp.ne.s32.totalorder %s79, %s81
      %p88 = scmp.eq.s32.totalorder %s24, 1
      %p89 = por %p87, %p88
      %p90 = scmp.ne.s32.totalorder %s81, %s82
      %p91 = scmp.eq.s32.totalorder %s24, 0
      %p92 = por %p90, %p91
      %p93 = scmp.ne.s32.totalorder %s81, %s82
      %p94 = scmp.eq.s32.totalorder %s25, 1
      %p95 = por %p93, %p94
      %p97 = scmp.ne.s32.totalorder %s82, %s96
      %p98 = scmp.eq.s32.totalorder %s25, 0
      %p99 = por %p97, %p98
      %s101 = sadd.s32 %s100, 1
      %p104 = scmp.eq.s32.totalorder %s19, 1
      %p105 = scmp.ne.s32.totalorder %s100, %s102
      %p106 = scmp.eq.s32.totalorder %s19, 0
      %p107 = por %p105, %p106
      %p108 = scmp.ne.s32.totalorder %s100, %s102
      %p109 = scmp.eq.s32.totalorder %s24, 1
      %p110 = por %p108, %p109
      %p111 = scmp.ne.s32.totalorder %s102, %s103
      %p112 = scmp.eq.s32.totalorder %s24, 0
      %p113 = por %p111, %p112
      %p114 = scmp.ne.s32.totalorder %s102, %s103
      %p115 = scmp.eq.s32.totalorder %s25, 1
      %p116 = por %p114, %p115
      %p118 = scmp.ne.s32.totalorder %s103, %s117
      %p119 = scmp.eq.s32.totalorder %s25, 0
      %p120 = por %p118, %p119
      %s121 = ssub.s32 %s19, %s26
      %p122 = scmp.eq.s32.totalorder %s121, 0
      %s124 = sadd.s32 %s123, 1
      %s125 = scalar_select %p122, %s123, %s124
      %p128 = pneg %p122
      %p129 = scmp.eq.s32.totalorder %s19, 1
      %p130 = por %p128, %p129
      %p131 = scmp.ne.s32.totalorder %s123, %s126
      %p132 = scmp.eq.s32.totalorder %s19, 0
      %p133 = por %p131, %p132
      %p134 = scmp.ne.s32.totalorder %s123, %s126
      %p135 = scmp.eq.s32.totalorder %s24, 1
      %p136 = por %p134, %p135
      %p137 = scmp.ne.s32.totalorder %s126, %s127
      %p138 = scmp.eq.s32.totalorder %s24, 0
      %p139 = por %p137, %p138
      %p140 = scmp.ne.s32.totalorder %s126, %s127
      %p141 = scmp.eq.s32.totalorder %s25, 1
      %p142 = por %p140, %p141
      %p144 = scmp.ne.s32.totalorder %s127, %s143
      %p145 = scmp.eq.s32.totalorder %s25, 0
      %p146 = por %p144, %p145
      %p147 = scmp.le.s32.totalorder 1, %s19
      %p148 = scmp.lt.s32.totalorder %s19, 3
      %p149 = pnand %p147, %p148
      %p150 = pneg %p149
      // Predicated region
      $region9: #{tpu_custom_call.1} parent=5 // pred_check
        _
      $region10: #{tpu_custom_call.1} parent=5 // pred_check_branch
        %152 = sbr.rel (%p149) target = $region12
      $region11: #{tpu_custom_call.1} parent=5 // pred_region
        %s153 = ssub.s32 %s19, 1
        // Predicated region
        $region13: #{tpu_custom_call.1} parent=11 // pred_check
          %p154 = pneg %p92
        $region14: #{tpu_custom_call.1} parent=11 // pred_check_branch
          %156 = sbr.rel (%p154) target = $region16
        $region15: #{tpu_custom_call.1} parent=11 // pred_region
          %s158 = ssub.s32 512, 512
          %159 = vsyncadd [#allocation6], %s158
          %s160 = sshll.u32 [#allocation7], 4
          %s161 = int_to_ptr.vmem [resolvable:$true] %s160
          %166 = dma.hbm_to_vmem [thread:$0]  %s2, 512, %s161, [#allocation6], 128, 128, 8
        $region16: #{tpu_custom_call.1} parent=11 // pred_fallthru
          _
        // Predicated region
        $region17: #{tpu_custom_call.1} parent=11 // pred_check
          %p167 = pneg %p113
        $region18: #{tpu_custom_call.1} parent=11 // pred_check_branch
          %169 = sbr.rel (%p167) target = $region20
        $region19: #{tpu_custom_call.1} parent=11 // pred_region
          _
        $region20: #{tpu_custom_call.1} parent=11 // pred_fallthru
          _
      $region12: #{tpu_custom_call.1} parent=5 // pred_fallthru
        _
      %p170 = scmp.lt.s32.totalorder %s19, 2
      // Predicated region
      $region21: #{tpu_custom_call.1} parent=5 // pred_check
        %p171 = pneg %p170
      $region22: #{tpu_custom_call.1} parent=5 // pred_check_branch
        %173 = sbr.rel (%p171) target = $region24
      $region23: #{tpu_custom_call.1} parent=5 // pred_region
        // Predicated region
        $region25: #{tpu_custom_call.1} parent=23 // pred_check
          %p174 = pneg %p39
        $region26: #{tpu_custom_call.1} parent=23 // pred_check_branch
          %176 = sbr.rel (%p174) target = $region28
        $region27: #{tpu_custom_call.1} parent=23 // pred_region
          %s177 = sand.u32 %s29, 1
          %s178 = scalar_lea.sflag [#allocation3], %s177
          %s179 = sand.u32 %s29, 1
          %s180 = smul.addr %s179, 16
          %s181 = scalar_lea.vmem [#allocation2], %s180
          %s183 = ssub.s32 256, 256
          %184 = vsyncadd %s178, %s183
          %s185 = smul.addr %s19, 128
          %s186 = scalar_lea.hbm %s0, %s185
          %s187 = sshll.u32 %s181, 4
          %s188 = int_to_ptr.vmem [resolvable:$true] %s187
          %193 = dma.hbm_to_vmem [thread:$0]  %s186, 256, %s188, %s178, 256, 128, 8
        $region28: #{tpu_custom_call.1} parent=23 // pred_fallthru
          _
        // Predicated region
        $region29: #{tpu_custom_call.1} parent=23 // pred_check
          %p194 = pneg %p65
        $region30: #{tpu_custom_call.1} parent=23 // pred_check_branch
          %196 = sbr.rel (%p194) target = $region32
        $region31: #{tpu_custom_call.1} parent=23 // pred_region
          %s197 = sand.u32 %s19, 1
          %s198 = scalar_lea.sflag [#allocation6], %s197
          %s199 = sand.u32 %s55, 1
          %s200 = smul.addr %s199, 16
          %s201 = scalar_lea.vmem [#allocation5], %s200
          %s203 = ssub.s32 256, 256
          %204 = vsyncadd %s198, %s203
          %s205 = smul.addr %s19, 128
          %s206 = scalar_lea.hbm %s1, %s205
          %s207 = sshll.u32 %s201, 4
          %s208 = int_to_ptr.vmem [resolvable:$true] %s207
          %213 = dma.hbm_to_vmem [thread:$0]  %s206, 256, %s208, %s198, 256, 128, 8
        $region32: #{tpu_custom_call.1} parent=23 // pred_fallthru
          _
      $region24: #{tpu_custom_call.1} parent=5 // pred_fallthru
        _
      %p214 = scmp.le.s32.totalorder 1, %s19
      %p215 = scmp.lt.s32.totalorder %s19, 3
      %p216 = pnand %p214, %p215
      %p217 = pneg %p216
      // Predicated region
      $region33: #{tpu_custom_call.1} parent=5 // pred_check
        _
      $region34: #{tpu_custom_call.1} parent=5 // pred_check_branch
        %219 = sbr.rel (%p216) target = $region36
      $region35: #{tpu_custom_call.1} parent=5 // pred_region
        %s220 = ssub.s32 %s19, 1
        %s221 = sand.u32 %s32, 1
        %s222 = scalar_lea.sflag [#allocation3], %s221
        %s223 = sand.u32 %s32, 1
        %s224 = smul.addr %s223, 16
        %s225 = scalar_lea.vmem [#allocation2], %s224
        // Predicated region
        $region37: #{tpu_custom_call.1} parent=35 // pred_check
          %p226 = pneg %p45
        $region38: #{tpu_custom_call.1} parent=35 // pred_check_branch
          %228 = sbr.rel (%p226) target = $region40
        $region39: #{tpu_custom_call.1} parent=35 // pred_region
          %229 = dma.done %s222, 256
        $region40: #{tpu_custom_call.1} parent=35 // pred_fallthru
          _
        %s230 = sand.u32 %s24, 1
        %s231 = scalar_lea.sflag [#allocation6], %s230
        %s232 = sand.u32 %s58, 1
        %s233 = smul.addr %s232, 16
        %s234 = scalar_lea.vmem [#allocation5], %s233
        // Predicated region
        $region41: #{tpu_custom_call.1} parent=35 // pred_check
          %p235 = pneg %p71
        $region42: #{tpu_custom_call.1} parent=35 // pred_check_branch
          %237 = sbr.rel (%p235) target = $region44
        $region43: #{tpu_custom_call.1} parent=35 // pred_region
          %238 = dma.done %s231, 256
        $region44: #{tpu_custom_call.1} parent=35 // pred_fallthru
          _
        // Predicated region
        $region45: #{tpu_custom_call.1} parent=35 // pred_check
          %p239 = pneg %p92
        $region46: #{tpu_custom_call.1} parent=35 // pred_check_branch
          %241 = sbr.rel (%p239) target = $region48
        $region47: #{tpu_custom_call.1} parent=35 // pred_region
          %242 = dma.done [#allocation6], 512
        $region48: #{tpu_custom_call.1} parent=35 // pred_fallthru
          _
        %s243 = sand.u32 %s32, 1
        %s244 = scalar_lea.sflag [#allocation3], %s243
        %s245 = sand.u32 %s32, 1
        %s246 = smul.addr %s245, 16
        %s247 = scalar_lea.vmem [#allocation2], %s246
        %p248 = pneg %p45
        %p249 = pneg %p42
        %s250 = sand.u32 %s24, 1
        %s251 = scalar_lea.sflag [#allocation6], %s250
        %s252 = sand.u32 %s58, 1
        %s253 = smul.addr %s252, 16
        %s254 = scalar_lea.vmem [#allocation5], %s253
        %p255 = pneg %p71
        %p256 = pneg %p68
        %p257 = pneg %p92
        %p258 = pneg %p89
        %p259 = pneg %p113
        %p260 = pneg %p110
        %p261 = pneg %p139
        %p262 = pneg %p136
        %s263 = sand.u32 %s126, 1
        %s264 = scalar_lea.sflag [#allocation4], %s263
        %s265 = sand.u32 %s126, 1
        %s266 = smul.addr %s265, 16
        %s267 = scalar_lea.vmem [#allocation8], %s266
        %v268 = vld [vmem:[%s225] sm:$0xff]
        %v269 = vld [vmem:[%s225 + $0x8] sm:$0xff]
        %vm270 = vcmask 261120
        %v271 = vsel %vm270, %v268, 0.0
        %v272 = vsel %vm270, %v269, 0.0
        %v273 = vadd.f32 %v271, %v272
        %274 = vadd.xlane.f32.xlu0 %v273
        %v275 = vpop.xlane.xlu0 %274
        %v276 = vrcp.pop 64.0
        %v277 = vmul.f32 %v275, %v276
        %v278 = vmul.f32 %v268, %v268
        %v279 = vmul.f32 %v269, %v269
        %v280 = vsel %vm270, %v278, 0.0
        %v281 = vsel %vm270, %v279, 0.0
        %v282 = vadd.f32 %v280, %v281
        %283 = vadd.xlane.f32.xlu0 %v282
        %v284 = vpop.xlane.xlu0 %283
        %v285 = vmul.f32 %v284, %v276
        %v286 = vmul.f32 %v277, %v277
        %v287 = vsub.f32 %v285, %v286
        %v288 = vsub.f32 %v268, %v277
        %v289 = vsub.f32 %v269, %v277
        %v290 = vadd.f32 %v287, 1e-05
        %v291 = vrsqrt.pop %v290
        %v292 = vmul.f32 %v288, %v291
        %v293 = vmul.f32 %v289, %v291
        %v294 = vld [vmem:[#allocation7] sm:$0xff]
        %v295 = vld [vmem:[#allocation7 + $0x8] sm:$0xff]
        %v296 = vld [vmem:[#allocation7 + $0x10] sm:$0xff]
        %v297 = vld [vmem:[#allocation7 + $0x18] sm:$0xff]
        %v298 = vld [vmem:[%s3] sm:$0x1]
        %v300 = vlaneseq
        %v301 = vshrl.u32 %v300, 7
        %v302 = vsub.s32 0, %v301
        %v303 = vrot.slane %v298, %v302
        %v306 = vsel %vm270, %v292, 0
        %v309 = vsel %vm270, %v293, 0
        %311 = vmatprep.subr.mxu0 0.0
        %312 = vmatpush1.msra.mxu0 %v294
        %313 = vmatprep.subr.mxu0 0.0
        %314 = vmatpush1.msra.mxu0 %v295
        %315 = vmatprep.subr.mxu0 0.0
        %316 = vmatpush1.msra.mxu0 %v296
        %317 = vmatprep.subr.mxu0 0.0
        %318 = vmatpush1.msra.mxu0 %v297
        %319 = vmatprep.subr.mxu0 0.0
        %320 = vmatpush1.msra.mxu0 0.0
        %321 = vmatprep.subr.mxu0 0.0
        %322 = vmatpush1.msra.mxu0 0.0
        %323 = vmatprep.subr.mxu0 0.0
        %324 = vmatpush1.msra.mxu0 0.0
        %325 = vmatprep.subr.mxu0 0.0
        %326 = vmatpush1.msra.mxu0 0.0
        %327 = vmatprep.subr.mxu0 0.0
        %328 = vmatpush1.msra.mxu0 0.0
        %329 = vmatprep.subr.mxu0 0.0
        %330 = vmatpush1.msra.mxu0 0.0
        %331 = vmatprep.subr.mxu0 0.0
        %332 = vmatpush1.msra.mxu0 0.0
        %333 = vmatprep.subr.mxu0 0.0
        %334 = vmatpush1.msra.mxu0 0.0
        %335 = vmatprep.subr.mxu0 0.0
        %336 = vmatpush1.msra.mxu0 0.0
        %337 = vmatprep.subr.mxu0 0.0
        %338 = vmatpush1.msra.mxu0 0.0
        %339 = vmatprep.subr.mxu0 0.0
        %340 = vmatpush1.msra.mxu0 0.0
        %341 = vmatprep.subr.mxu0 0.0
        %342 = vmatpush1.msra.mxu0 0.0
        %343 = vmatprep.subr.mxu0 0.0
        %344 = vmatpush1.msra.mxu0 0.0
        %345 = vmatprep.subr.mxu0 0.0
        %346 = vmatpush1.msra.mxu0 0.0
        %347 = vmatprep.subr.mxu0 0.0
        %348 = vmatpush1.msra.mxu0 0.0
        %349 = vmatprep.subr.mxu0 0.0
        %350 = vmatpush1.msra.mxu0 0.0
        %351 = vmatprep.subr.mxu0 0.0
        %352 = vmatpush1.msra.mxu0 0.0
        %353 = vmatprep.subr.mxu0 0.0
        %354 = vmatpush1.msra.mxu0 0.0
        %355 = vmatprep.subr.mxu0 0.0
        %356 = vmatpush1.msra.mxu0 0.0
        %357 = vmatprep.subr.mxu0 0.0
        %358 = vmatpush1.msra.mxu0 0.0
        %359 = vmatprep.subr.mxu0 0.0
        %360 = vmatpush1.msra.mxu0 0.0
        %361 = vmatprep.subr.mxu0 0.0
        %362 = vmatpush1.msra.mxu0 0.0
        %363 = vmatprep.subr.mxu0 0.0
        %364 = vmatpush1.msra.mxu0 0.0
        %365 = vmatprep.subr.mxu0 0.0
        %366 = vmatpush1.msra.mxu0 0.0
        %367 = vmatprep.subr.mxu0 0.0
        %368 = vmatpush1.msra.mxu0 0.0
        %369 = vmatprep.subr.mxu0 0.0
        %370 = vmatpush1.msra.mxu0 0.0
        %371 = vmatprep.subr.mxu0 0.0
        %372 = vmatpush1.msra.mxu0 0.0
        %373 = vmatprep.subr.mxu0 0.0
        %374 = vmatpush1.msra.mxu0 0.0
        %375 = vmatprep.mubr.f32.mxu0 0.0
        %376 = vmatmul.mubr.f32.gmra.mrb[0].mxu0 %v306
        %v377 = vpop.f32.mrb[0].mxu0
        %v378 = vadd.f32 %v303, %v377
        %v379 = vpop.f32.mrb[0].mxu0
        %380 = vmatprep.mubr.f32.mxu0 0.0
        %381 = vmatmul.mubr.f32.gmra.mrb[0].mxu0 %v309
        %v382 = vpop.f32.mrb[0].mxu0
        %v383 = vadd.f32 %v303, %v382
        %v384 = vpop.f32.mrb[0].mxu0
        %385 = vdwg.mxu0
        %v386 = vld [vmem:[%s234] sm:$0xff]
        %v387 = vld [vmem:[%s234 + $0x8] sm:$0xff]
        %vm388 = vcmp.ge.s32.totalorder %v386, 2576980378
        %vm389 = vcmp.ge.s32.totalorder %v387, 2576980378
        %v390 = vsel %vm388, %v378, 0.0
        %v391 = vsel %vm389, %v383, 0.0
        %v392 = vadd.f32 %v268, %v390
        %v393 = vadd.f32 %v269, %v391
        %394 = vst.msk [vmem:[%s267] sm:$0xff] %vm270, %v392
        %395 = vst.msk [vmem:[%s267 + $0x8] sm:$0xff] %vm270, %v393
        %s396 = sand.u32 %s126, 1
        %s397 = scalar_lea.sflag [#allocation4], %s396
        %s398 = sand.u32 %s126, 1
        %s399 = smul.addr %s398, 16
        %s400 = scalar_lea.vmem [#allocation8], %s399
        // Predicated region
        $region49: #{tpu_custom_call.1} parent=35 // pred_check
          %p401 = pneg %p136
        $region50: #{tpu_custom_call.1} parent=35 // pred_check_branch
          %403 = sbr.rel (%p401) target = $region52
        $region51: #{tpu_custom_call.1} parent=35 // pred_region
          %s405 = ssub.s32 256, 256
          %406 = vsyncadd %s397, %s405
          %s407 = smul.addr %s24, 128
          %s408 = scalar_lea.hbm %s4, %s407
          %s409 = sshll.u32 %s400, 4
          %s410 = int_to_ptr.vmem [resolvable:$true] %s409
          %415 = dma.vmem_to_hbm [thread:$0]  %s410, 256, %s408, %s397, 128, 256, 8
        $region52: #{tpu_custom_call.1} parent=35 // pred_fallthru
          _
      $region36: #{tpu_custom_call.1} parent=5 // pred_fallthru
        _
      %p416 = scmp.le.s32.totalorder 2, %s19
      // Predicated region
      $region53: #{tpu_custom_call.1} parent=5 // pred_check
        %p417 = pneg %p416
      $region54: #{tpu_custom_call.1} parent=5 // pred_check_branch
        %419 = sbr.rel (%p417) target = $region56
      $region55: #{tpu_custom_call.1} parent=5 // pred_region
        %s420 = ssub.s32 %s19, 2
        // Predicated region
        $region57: #{tpu_custom_call.1} parent=55 // pred_check
          %p421 = pneg %p142
        $region58: #{tpu_custom_call.1} parent=55 // pred_check_branch
          %423 = sbr.rel (%p421) target = $region60
        $region59: #{tpu_custom_call.1} parent=55 // pred_region
          %s424 = sand.u32 %s127, 1
          %s425 = scalar_lea.sflag [#allocation4], %s424
          %s426 = sand.u32 %s127, 1
          %s427 = smul.addr %s426, 16
          %s428 = scalar_lea.vmem [#allocation8], %s427
          %429 = dma.done %s425, 256
        $region60: #{tpu_custom_call.1} parent=55 // pred_fallthru
          _
      $region56: #{tpu_custom_call.1} parent=5 // pred_fallthru
        _
    $region6: #{tpu_custom_call.1} parent=1 // loop_footer
      %s23 = sadd.s32 1, %s19
    $region7: #{tpu_custom_call.1} parent=1 // loop_footer_branch
      %18 = sbr.rel target = $region3
    $region8: #{tpu_custom_call.1} parent=1 // loop_exit
      _
    %430 = vsyncpa [#allocation3], 1
    %s431 = scalar_lea.sflag [#allocation3], 1
    %432 = vsyncpa %s431, 1
    %433 = vsyncpa [#allocation6], 1
    %s434 = scalar_lea.sflag [#allocation6], 1
    %435 = vsyncpa %s434, 1
    %436 = vsyncpa [#allocation4], 1
    %s437 = scalar_lea.sflag [#allocation4], 1
    %438 = vsyncpa %s437, 1

</llo_original>
